<compile_context>
chip_gen: v7x
topology: tpu7x:2x2x1
jax: 0.10.0
libtpu: 0.0.40
codegen_flags: <defaults>
</compile_context>

<pallas_src>
import functools

import jax
import jax.numpy as jnp
from jax import lax
from jax.experimental import pallas as pl
from jax.experimental.pallas import tpu as pltpu


def spe_attention_kernel(x_ref, p_ref, w_ref, o_ref, *, inv_seq_len):
    # x_ref: (Bt, S, D)   block of batch rows (native dtype)
    # p_ref: (8, D) f32   row 0 = conv tap on max, row 1 = tap on avg, row 2 = bias
    # w_ref: (D_out, D_in) gate weight, torch layout (contracted on dim 1)
    # o_ref: (Bt, S, D)
    x = x_ref[...]
    # Reduce straight out of the native-dtype block: no full f32 copy of x.
    m = jnp.max(x, axis=1).astype(jnp.float32)                 # (Bt, D)
    a = jnp.sum(x, axis=1, dtype=jnp.float32) * inv_seq_len    # (Bt, D)
    c = p_ref[0:1, :] * m + p_ref[1:2, :] * a + p_ref[2:3, :]  # (Bt, D)
    # c @ W^T on the MXU, expressed as a dim-1/dim-1 contraction (no transpose copy).
    q = jax.nn.sigmoid(
        lax.dot_general(c.astype(w_ref.dtype), w_ref[...],
                        dimension_numbers=(((1,), (1,)), ((), ())),
                        preferred_element_type=jnp.float32))   # (Bt, D_out)
    o_ref[...] = (x * q.astype(x.dtype)[:, None, :]).astype(o_ref.dtype)


def _vmem_capacity_bytes():
    """Physical VMEM per TensorCore; conservative fallback = 64 MiB (v7x)."""
    try:
        info = pltpu.get_tpu_info()
        cap = getattr(info, "vmem_capacity_bytes", None)
        if cap:
            return int(cap)
    except Exception:
        pass
    return 64 * 1024 * 1024


def _pick_batch_tile(B, row_bytes, block_budget):
    """Batch rows per grid step: as large as fits, avoiding tiny tiles / odd splits."""
    bt = int(max(1, min(B, block_budget // max(row_bytes, 1))))
    if bt >= B:
        return B                                  # single grid step, everything resident
    # Prefer an exact divisor of B (no ragged tail) if one exists near the budget.
    for cand in range(bt, max(1, bt // 2) - 1, -1):
        if B % cand == 0:
            bt = cand
            break
    # Otherwise keep bt and let the grid carry a ragged tail: all math is
    # per-batch-row, so padded tail rows are harmless and masked on store.
    # Megacore: prefer an even number of grid steps so both TensorCores get
    # equal work, as long as the tile does not shrink below ~half the budget.
    steps = -(-B // bt)
    if steps >= 2 and steps % 2 == 1:
        for cand in range(bt, max(1, bt // 2) - 1, -1):
            if (-(-B // cand)) % 2 == 0:
                bt = cand
                break
    return bt


def spe_attention(x, conv_w, conv_b, lin_w):
    """x: (B, S, D); conv_w: (D, 1, 2) torch layout; conv_b: (D,); lin_w: (D_out, D_in)."""
    B, S, D = x.shape
    D_out = lin_w.shape[0]

    # Pack the tiny grid-invariant conv parameters into one (8, D) f32 operand
    # (sublane padding to 8 happens anyway): one DMA / buffer instead of two.
    params = jnp.zeros((8, D), jnp.float32)
    params = params.at[0].set(conv_w[:, 0, 0].astype(jnp.float32))   # tap applied to max
    params = params.at[1].set(conv_w[:, 0, 1].astype(jnp.float32))   # tap applied to avg
    params = params.at[2].set(conv_b.astype(jnp.float32))            # bias

    itemsize = jnp.dtype(x.dtype).itemsize
    row_bytes = S * D * itemsize

    vmem_cap = _vmem_capacity_bytes()
    usable = int(0.75 * vmem_cap)                  # headroom for compiler scratch/bookkeeping
    block_budget = max(2 * 1024 * 1024, usable // 8)   # per x block (~4 live: in/out x 2 bufs)

    # Gate weight: bf16 when x is low precision or an f32 DxD copy would crowd
    # VMEM (MXU-native either way); f32 for f32 inputs to match the reference.
    w_bytes_f32 = D * D_out * 4
    use_bf16_w = (x.dtype != jnp.float32) or (2 * w_bytes_f32 > usable // 4)
    w_dtype = jnp.bfloat16 if use_bf16_w else jnp.float32
    w = lin_w.astype(w_dtype)                      # torch (out, in) layout, no transpose copy

    # TODO(synk): add an S-tiled two-pass path when a single batch row exceeds
    # block_budget (huge S*D); today such rows fall back to one row per step.
    bt = _pick_batch_tile(B, row_bytes, block_budget)
    grid = (pl.cdiv(B, bt),)

    vmem_need = (4 * bt * row_bytes                              # x + out blocks, 2 buffers each
                 + 2 * D * D_out * jnp.dtype(w_dtype).itemsize   # gate weight
                 + 2 * 8 * D * 4                                 # packed conv params
                 + 8 * bt * max(D, D_out) * 4                    # m/a/c/q temporaries
                 + (2 << 20))                                    # slack
    vmem_limit = int(min(usable, max(16 * 1024 * 1024, vmem_need)))

    kernel = functools.partial(spe_attention_kernel, inv_seq_len=1.0 / S)

    return pl.pallas_call(
        kernel,
        out_shape=jax.ShapeDtypeStruct((B, S, D), x.dtype),
        grid=grid,
        in_specs=[
            pl.BlockSpec((bt, S, D), lambda b: (b, 0, 0)),
            pl.BlockSpec((8, D), lambda b: (0, 0)),
            pl.BlockSpec((D_out, D), lambda b: (0, 0)),
        ],
        out_specs=pl.BlockSpec((bt, S, D), lambda b: (b, 0, 0)),
        compiler_params=pltpu.CompilerParams(
            dimension_semantics=("parallel",),
            vmem_limit_bytes=vmem_limit,
        ),
    )(x, params, w)


def spe_attention_ref(x, conv_w, conv_b, lin_w):
    """Plain-JAX reference mirroring the PyTorch forward."""
    m = jnp.max(x, axis=1)                                   # (B, D)
    a = jnp.mean(x, axis=1)                                  # (B, D)
    c = conv_w[:, 0, 0] * m + conv_w[:, 0, 1] * a + conv_b   # (B, D)
    q = jax.nn.sigmoid(c @ lin_w.T)                          # (B, D)
    return x * q[:, None, :]                                 # (B, S, D)


if __name__ == "__main__":
    B, S, D = 2, 8, 32   # batch, seq_len, embed_dim

    key = jax.random.PRNGKey(0)
    kx, kw, kb, kl = jax.random.split(key, 4)

    x = jax.random.normal(kx, (B, S, D), dtype=jnp.float32)
    # Conv1d(embed_dim, embed_dim, k=2, groups=embed_dim): weight (D, 1, 2), bias (D,)
    conv_w = jax.random.normal(kw, (D, 1, 2), dtype=jnp.float32) * 0.5
    conv_b = jax.random.normal(kb, (D,), dtype=jnp.float32) * 0.1
    # Linear(embed_dim, embed_dim, bias=False): weight (D_out, D_in)
    lin_w = jax.random.normal(kl, (D, D), dtype=jnp.float32) * (1.0 / jnp.sqrt(D))

    out = spe_attention(x, conv_w, conv_b, lin_w)
    out = jax.block_until_ready(out)

    ref = spe_attention_ref(x, conv_w, conv_b, lin_w)
    assert out.shape == (B, S, D)
    assert jnp.allclose(out, ref, atol=1e-5, rtol=1e-5), "mismatch vs reference"

    print("KERNEL_OK")
</pallas_src>

<mosaic_0001>
module attributes {stable_mosaic.version = 11 : i64} {
  func.func @spe_attention_kernel(%arg0: i32, %arg1: memref<2x8x32xf32, #tpu.memory_space<vmem>>, %arg2: memref<8x32xf32, #tpu.memory_space<vmem>>, %arg3: memref<32x32xf32, #tpu.memory_space<vmem>>, %arg4: memref<2x8x32xf32, #tpu.memory_space<vmem>>) attributes {dimension_semantics = [#tpu.dimension_semantics<parallel>], iteration_bounds = array<i64: 1>, scalar_prefetch = 0 : i64, scratch_operands = 0 : i64, tpu.core_type = #tpu.core_type<tc>, window_params = [{transform_indices = @transform_0, window_bounds = array<i64: 2, 8, 32>}, {pipeline_mode = #tpu.pipeline_mode<synchronous>, transform_indices = @transform_1, window_bounds = array<i64: 8, 32>}, {pipeline_mode = #tpu.pipeline_mode<synchronous>, transform_indices = @transform_2, window_bounds = array<i64: 32, 32>}, {transform_indices = @transform_3, window_bounds = array<i64: 2, 8, 32>}]} {
    %c0 = arith.constant 0 : index
    %c0_0 = arith.constant 0 : index
    %c0_1 = arith.constant 0 : index
    %0 = vector.load %arg1[%c0, %c0_0, %c0_1] : memref<2x8x32xf32, #tpu.memory_space<vmem>>, vector<2x8x32xf32>
    %cst = arith.constant dense<0xFF800000> : vector<2x32xf32>
    %1 = vector.multi_reduction <maximumf>, %0, %cst [1] : vector<2x8x32xf32> to vector<2x32xf32>
    %cst_2 = arith.constant dense<0.000000e+00> : vector<2x32xf32>
    %2 = vector.multi_reduction <add>, %0, %cst_2 [1] : vector<2x8x32xf32> to vector<2x32xf32>
    %cst_3 = arith.constant 1.250000e-01 : f32
    %3 = vector.broadcast %cst_3 : f32 to vector<2x32xf32>
    %4 = arith.mulf %2, %3 : vector<2x32xf32>
    %c0_4 = arith.constant 0 : index
    %c0_5 = arith.constant 0 : index
    %5 = vector.load %arg2[%c0_4, %c0_5] : memref<8x32xf32, #tpu.memory_space<vmem>>, vector<1x32xf32>
    %6 = vector.broadcast %5 : vector<1x32xf32> to vector<2x32xf32>
    %7 = arith.mulf %6, %1 : vector<2x32xf32>
    %c1 = arith.constant 1 : index
    %c0_6 = arith.constant 0 : index
    %8 = vector.load %arg2[%c1, %c0_6] : memref<8x32xf32, #tpu.memory_space<vmem>>, vector<1x32xf32>
    %9 = vector.broadcast %8 : vector<1x32xf32> to vector<2x32xf32>
    %10 = arith.mulf %9, %4 : vector<2x32xf32>
    %11 = arith.addf %7, %10 : vector<2x32xf32>
    %c2 = arith.constant 2 : index
    %c0_7 = arith.constant 0 : index
    %12 = vector.load %arg2[%c2, %c0_7] : memref<8x32xf32, #tpu.memory_space<vmem>>, vector<1x32xf32>
    %13 = vector.broadcast %12 : vector<1x32xf32> to vector<2x32xf32>
    %14 = arith.addf %11, %13 : vector<2x32xf32>
    %c0_8 = arith.constant 0 : index
    %c0_9 = arith.constant 0 : index
    %15 = vector.load %arg3[%c0_8, %c0_9] : memref<32x32xf32, #tpu.memory_space<vmem>>, vector<32x32xf32>
    %cst_10 = arith.constant dense<0.000000e+00> : vector<2x32xf32>
    %16 = tpu.matmul %14, %15, %cst_10 {dimension_numbers = #tpu.dot_dimension_numbers<[1], [1], [0], [0], [0, 0, 1, 0], [], []>} : vector<2x32xf32>, vector<32x32xf32>, vector<2x32xf32> -> vector<2x32xf32>
    %17 = arith.negf %16 : vector<2x32xf32>
    %18 = math.exp %17 : vector<2x32xf32>
    %cst_11 = arith.constant 1.000000e+00 : f32
    %19 = vector.broadcast %cst_11 : f32 to vector<2x32xf32>
    %20 = arith.addf %19, %18 : vector<2x32xf32>
    %21 = arith.divf %19, %20 : vector<2x32xf32>
    %22 = vector.shape_cast %21 : vector<2x32xf32> to vector<2x1x32xf32>
    %23 = vector.broadcast %22 : vector<2x1x32xf32> to vector<2x8x32xf32>
    %24 = arith.mulf %0, %23 : vector<2x8x32xf32>
    %c0_12 = arith.constant 0 : index
    %c0_13 = arith.constant 0 : index
    %c0_14 = arith.constant 0 : index
    %25 = vector.load %arg4[%c0_12, %c0_13, %c0_14] : memref<2x8x32xf32, #tpu.memory_space<vmem>>, vector<2x8x32xf32>
    tpu.vector_store %arg4[%c0_12, %c0_13, %c0_14], %24 {strides = array<i32>} : memref<2x8x32xf32, #tpu.memory_space<vmem>>, vector<2x8x32xf32>,
    return
  }
  func.func @transform_0(%arg0: i32) -> (i32, i32, i32) {
    %c0_i32 = arith.constant 0 : i32
    %c0_i32_0 = arith.constant 0 : i32
    %c0_i32_1 = arith.constant 0 : i32
    return %arg0, %c0_i32, %c0_i32_0 : i32, i32, i32
  }
  func.func @transform_1(%arg0: i32) -> (i32, i32) {
    %c0_i32 = arith.constant 0 : i32
    %c0_i32_0 = arith.constant 0 : i32
    %c0_i32_1 = arith.constant 0 : i32
    return %c0_i32, %c0_i32_0 : i32, i32
  }
  func.func @transform_2(%arg0: i32) -> (i32, i32) {
    %c0_i32 = arith.constant 0 : i32
    %c0_i32_0 = arith.constant 0 : i32
    %c0_i32_1 = arith.constant 0 : i32
    return %c0_i32, %c0_i32_0 : i32, i32
  }
  func.func @transform_3(%arg0: i32) -> (i32, i32, i32) {
    %c0_i32 = arith.constant 0 : i32
    %c0_i32_0 = arith.constant 0 : i32
    %c0_i32_1 = arith.constant 0 : i32
    return %arg0, %c0_i32, %c0_i32_0 : i32, i32, i32
  }
}

</mosaic_0001>

<llo_original>
// kernel: tpu_custom_call.1
$region0: #{tpu_custom_call.1}
  #allocation0 [shape = 'u32[]', space=smem, size = 0x4, offset = 0x4, fixed_abs, tag = 'smem constant byte address 0x4 - core index']
  #allocation1 [shape = 'u32[144,128]{1,0:T(1,128)}', space=vmem, size = 0x12000, scoped, tag = 'internal scratch']
  %s0 = inlined_call_operand.hbm [shape: f32[2,8,32], index: 0, kind: input, shape index: {}]
  %s1 = inlined_call_operand.hbm [shape: f32[8,32], index: 1, kind: input, shape index: {}]
  %s2 = inlined_call_operand.hbm [shape: f32[32,32], index: 2, kind: input, shape index: {}]
  %s3 = inlined_call_operand.hbm [shape: f32[2,8,32], index: 3, kind: output, shape index: {}]
  %s4 = sld [smem:[#allocation0]]
  $region34: #{tpu_custom_call.1} parent=0
    _
  %s6 = ssub.s32 1, %s4
  %s7 = scalar_select 0, %s6, %s4
  $region1: #{tpu_custom_call.1} parent=0
    #allocation2 [shape = 'u8[8192]{0}', space=vmem, size = 0x2000, scoped, tag = 'input window, operand 0, single buffered']
    #allocation3 [shape = 's32[1]{0}', space=sflag, size = 0x4, scoped, tag = 'scoped memory for tpu_custom_call.1']
    #allocation4 [shape = 's32[1]{0}', space=sflag, size = 0x4, scoped, tag = 'scoped memory for tpu_custom_call.1']
    #allocation5 [shape = 'u8[4096]{0}', space=vmem, size = 0x1000, scoped, tag = 'input window, operand 1, single buffered']
    #allocation6 [shape = 's32[1]{0}', space=sflag, size = 0x4, scoped, tag = 'scoped memory for tpu_custom_call.1']
    #allocation7 [shape = 'u8[16384]{0}', space=vmem, size = 0x4000, scoped, tag = 'input window, operand 2, single buffered']
    #allocation8 [shape = 'u8[8192]{0}', space=vmem, size = 0x2000, scoped, tag = 'output window, operand 0, single buffered']
    %8 = vsyncpa [#allocation3], 0
    %9 = vsyncpa [#allocation6], 0
    %10 = vsyncpa [#allocation4], 0
    // Predicated region
    $region2: #{tpu_custom_call.1} parent=1 // pred_check
      _
    $region3: #{tpu_custom_call.1} parent=1 // pred_check_branch
      %12 = sbr.rel (0) target = $region5
    $region4: #{tpu_custom_call.1} parent=1 // pred_region
      %s14 = ssub.s32 256, 256
      %15 = vsyncadd [#allocation3], %s14
      %s16 = sshll.u32 [#allocation2], 4
      %s17 = int_to_ptr.vmem [resolvable:$true] %s16
      %22 = dma.hbm_to_vmem [thread:$0]  %s0, 256, %s17, [#allocation3], 128, 128, 8
    $region5: #{tpu_custom_call.1} parent=1 // pred_fallthru
      _
    // Predicated region
    $region6: #{tpu_custom_call.1} parent=1 // pred_check
      _
    $region7: #{tpu_custom_call.1} parent=1 // pred_check_branch
      %24 = sbr.rel (0) target = $region9
    $region8: #{tpu_custom_call.1} parent=1 // pred_region
      %s26 = ssub.s32 128, 128
      %27 = vsyncadd [#allocation6], %s26
      %s29 = sshll.u32 [#allocation5], 4
      %s30 = int_to_ptr.vmem [resolvable:$true] %s29
      %32 = dma.hbm_to_vmem [thread:$0]  %s1, 128, %s30, [#allocation6]
    $region9: #{tpu_custom_call.1} parent=1 // pred_fallthru
      _
    // Predicated region
    $region10: #{tpu_custom_call.1} parent=1 // pred_check
      _
    $region11: #{tpu_custom_call.1} parent=1 // pred_check_branch
      %34 = sbr.rel (0) target = $region13
    $region12: #{tpu_custom_call.1} parent=1 // pred_region
      %s36 = ssub.s32 512, 512
      %37 = vsyncadd [#allocation6], %s36
      %s38 = sshll.u32 [#allocation7], 4
      %s39 = int_to_ptr.vmem [resolvable:$true] %s38
      %44 = dma.hbm_to_vmem [thread:$0]  %s2, 512, %s39, [#allocation6], 128, 128, 8
    $region13: #{tpu_custom_call.1} parent=1 // pred_fallthru
      _
    // Predicated region
    $region14: #{tpu_custom_call.1} parent=1 // pred_check
      _
    $region15: #{tpu_custom_call.1} parent=1 // pred_check_branch
      %46 = sbr.rel (0) target = $region17
    $region16: #{tpu_custom_call.1} parent=1 // pred_region
      %47 = dma.done [#allocation3], 256
    $region17: #{tpu_custom_call.1} parent=1 // pred_fallthru
      _
    // Predicated region
    $region18: #{tpu_custom_call.1} parent=1 // pred_check
      _
    $region19: #{tpu_custom_call.1} parent=1 // pred_check_branch
      %49 = sbr.rel (0) target = $region21
    $region20: #{tpu_custom_call.1} parent=1 // pred_region
      %50 = dma.done [#allocation6], 128
    $region21: #{tpu_custom_call.1} parent=1 // pred_fallthru
      _
    // Predicated region
    $region22: #{tpu_custom_call.1} parent=1 // pred_check
      _
    $region23: #{tpu_custom_call.1} parent=1 // pred_check_branch
      %52 = sbr.rel (0) target = $region25
    $region24: #{tpu_custom_call.1} parent=1 // pred_region
      %53 = dma.done [#allocation6], 512
    $region25: #{tpu_custom_call.1} parent=1 // pred_fallthru
      _
    %v54 = vld [vmem:[#allocation2] sm:$0xff]
    %v55 = vld [vmem:[#allocation2 + $0x8] sm:$0xff]
    %vm56 = vcmask 261120
    %v57 = vsel %vm56, %v54, -inf
    %v58 = vrot.slane %v57, 4
    %v59 = vmax.f32 %v57, %v58
    %v60 = vrot.slane %v59, 2
    %v61 = vmax.f32 %v59, %v60
    %v62 = vrot.slane %v61, 1
    %v63 = vmax.f32 %v61, %v62
    %v64 = vsel %vm56, %v55, -inf
    %v65 = vrot.slane %v64, 4
    %v66 = vmax.f32 %v64, %v65
    %v67 = vrot.slane %v66, 2
    %v68 = vmax.f32 %v66, %v67
    %v69 = vrot.slane %v68, 1
    %v70 = vmax.f32 %v68, %v69
    %v71 = vsel %vm56, %v54, 0.0
    %v72 = vrot.slane %v71, 4
    %v73 = vadd.f32 %v71, %v72
    %v74 = vrot.slane %v73, 2
    %v75 = vadd.f32 %v73, %v74
    %v76 = vrot.slane %v75, 1
    %v77 = vadd.f32 %v75, %v76
    %v78 = vsel %vm56, %v55, 0.0
    %v79 = vrot.slane %v78, 4
    %v80 = vadd.f32 %v78, %v79
    %v81 = vrot.slane %v80, 2
    %v82 = vadd.f32 %v80, %v81
    %v83 = vrot.slane %v82, 1
    %v84 = vadd.f32 %v82, %v83
    %v85 = vmul.f32 %v77, 0.125
    %v86 = vmul.f32 %v84, 0.125
    %v87 = vld [vmem:[#allocation5] sm:$0x1]
    %v88 = vlaneseq
    %v89 = vshrl.u32 %v88, 7
    %v90 = vsub.s32 0, %v89
    %v91 = vrot.slane %v87, %v90
    %vm94 = vcmask 1041409
    %v95 = vsel %vm94, %v70, %v63
    %v97 = vmul.f32 %v91, %v95
    %v98 = vld [vmem:[#allocation5 + $0x1] sm:$0x1]
    %v99 = vlaneseq
    %v100 = vshrl.u32 %v99, 7
    %v101 = vsub.s32 0, %v100
    %v102 = vrot.slane %v98, %v101
    %v105 = vsel %vm94, %v86, %v85
    %v107 = vmul.f32 %v102, %v105
    %v108 = vadd.f32 %v97, %v107
    %v109 = vld [vmem:[#allocation5 + $0x2] sm:$0x1]
    %v110 = vlaneseq
    %v111 = vshrl.u32 %v110, 7
    %v112 = vsub.s32 0, %v111
    %v113 = vrot.slane %v109, %v112
    %v114 = vadd.f32 %v108, %v113
    %v115 = vld [vmem:[#allocation7] sm:$0xff]
    %v116 = vld [vmem:[#allocation7 + $0x8] sm:$0xff]
    %v117 = vld [vmem:[#allocation7 + $0x10] sm:$0xff]
    %v118 = vld [vmem:[#allocation7 + $0x18] sm:$0xff]
    %v120 = vsel %vm56, %v114, 0
    %v123 = vsel %vm56, %v115, 0
    %v126 = vsel %vm56, %v116, 0
    %v129 = vsel %vm56, %v117, 0
    %v132 = vsel %vm56, %v118, 0
    %134 = vmatprep.subr.mxu0 0.0
    %135 = vmatpush1.xpose.msra.mxu0 %v123
    %136 = vmatprep.subr.mxu0 0.0
    %137 = vmatpush1.xpose.msra.mxu0 %v126
    %138 = vmatprep.subr.mxu0 0.0
    %139 = vmatpush1.xpose.msra.mxu0 %v129
    %140 = vmatprep.subr.mxu0 0.0
    %141 = vmatpush1.xpose.msra.mxu0 %v132
    %142 = vmatprep.subr.mxu0 0.0
    %143 = vmatpush1.xpose.msra.mxu0 0.0
    %144 = vmatprep.subr.mxu0 0.0
    %145 = vmatpush1.xpose.msra.mxu0 0.0
    %146 = vmatprep.subr.mxu0 0.0
    %147 = vmatpush1.xpose.msra.mxu0 0.0
    %148 = vmatprep.subr.mxu0 0.0
    %149 = vmatpush1.xpose.msra.mxu0 0.0
    %150 = vmatprep.subr.mxu0 0.0
    %151 = vmatpush1.xpose.msra.mxu0 0.0
    %152 = vmatprep.subr.mxu0 0.0
    %153 = vmatpush1.xpose.msra.mxu0 0.0
    %154 = vmatprep.subr.mxu0 0.0
    %155 = vmatpush1.xpose.msra.mxu0 0.0
    %156 = vmatprep.subr.mxu0 0.0
    %157 = vmatpush1.xpose.msra.mxu0 0.0
    %158 = vmatprep.subr.mxu0 0.0
    %159 = vmatpush1.xpose.msra.mxu0 0.0
    %160 = vmatprep.subr.mxu0 0.0
    %161 = vmatpush1.xpose.msra.mxu0 0.0
    %162 = vmatprep.subr.mxu0 0.0
    %163 = vmatpush1.xpose.msra.mxu0 0.0
    %164 = vmatprep.subr.mxu0 0.0
    %165 = vmatpush1.xpose.msra.mxu0 0.0
    %166 = vmatprep.subr.mxu0 0.0
    %167 = vmatpush1.xpose.msra.mxu0 0.0
    %168 = vmatprep.subr.mxu0 0.0
    %169 = vmatpush1.xpose.msra.mxu0 0.0
    %170 = vmatprep.subr.mxu0 0.0
    %171 = vmatpush1.xpose.msra.mxu0 0.0
    %172 = vmatprep.subr.mxu0 0.0
    %173 = vmatpush1.xpose.msra.mxu0 0.0
    %174 = vmatprep.subr.mxu0 0.0
    %175 = vmatpush1.xpose.msra.mxu0 0.0
    %176 = vmatprep.subr.mxu0 0.0
    %177 = vmatpush1.xpose.msra.mxu0 0.0
    %178 = vmatprep.subr.mxu0 0.0
    %179 = vmatpush1.xpose.msra.mxu0 0.0
    %180 = vmatprep.subr.mxu0 0.0
    %181 = vmatpush1.xpose.msra.mxu0 0.0
    %182 = vmatprep.subr.mxu0 0.0
    %183 = vmatpush1.xpose.msra.mxu0 0.0
    %184 = vmatprep.subr.mxu0 0.0
    %185 = vmatpush1.xpose.msra.mxu0 0.0
    %186 = vmatprep.subr.mxu0 0.0
    %187 = vmatpush1.xpose.msra.mxu0 0.0
    %188 = vmatprep.subr.mxu0 0.0
    %189 = vmatpush1.xpose.msra.mxu0 0.0
    %190 = vmatprep.subr.mxu0 0.0
    %191 = vmatpush1.xpose.msra.mxu0 0.0
    %192 = vmatprep.subr.mxu0 0.0
    %193 = vmatpush1.xpose.msra.mxu0 0.0
    %194 = vmatprep.subr.mxu0 0.0
    %195 = vmatpush1.xpose.msra.mxu0 0.0
    %196 = vmatprep.subr.mxu0 0.0
    %197 = vmatpush1.xpose.msra.mxu0 0.0
    %198 = vmatprep.mubr.f32.mxu0 0.0
    %199 = vmatmul.mubr.f32.gmra.mrb[0].mxu0 %v120
    %v200 = vpop.f32.mrb[0].mxu0
    %v201 = vadd.f32 0.0, %v200
    %v202 = vpop.f32.mrb[0].mxu0
    %203 = vdwg.mxu0
    %v204 = vxor.u32 %v201, 2147483648
    %v205 = vmul.f32 %v204, 1.442695
    %v206 = vpow.pop %v205
    %v207 = vadd.f32 %v206, 1.0
    %v208 = vrcp.pop %v207
    %v209 = vmul.f32 1.0, %v208
    %v212 = vunpack.c.l.s4 1966171168
    %v213 = vunpack.c.0.s8 %v212
    %v214 = vlaneseq
    %v215 = vshrl.u32 %v214, 7
    %v216 = vsub.s32 %v213, %v215
    %v217 = vrot.slane %v209, %v216
    %v218 = vcombine.high %v217, %v217
    %v220 = vunpack.c.l.s4 1966171168
    %v221 = vunpack.c.0.s8 %v220
    %v222 = vlaneseq
    %v223 = vshrl.u32 %v222, 7
    %v224 = vsub.s32 %v221, %v223
    %v225 = vrot.slane %v217, %v224
    %v227 = vunpack.c.l.s4 1966171168
    %v228 = vunpack.c.0.s8 %v227
    %v229 = vlaneseq
    %v230 = vshrl.u32 %v229, 7
    %v231 = vsub.s32 %v228, %v230
    %v232 = vrot.slane %v218, %v231
    %v233 = vlaneseq
    %v234 = vshrl.u32 %v233, 7
    %v235 = vsub.s32 0, %v234
    %v236 = vrot.slane %v225, %v235
    %v237 = vlaneseq
    %v238 = vshrl.u32 %v237, 7
    %v239 = vsub.s32 0, %v238
    %v240 = vrot.slane %v232, %v239
    %v243 = vmul.f32 %v54, %v236
    %v244 = vmul.f32 %v55, %v240
    %245 = vst.msk [vmem:[#allocation8] sm:$0xff] %vm56, %v243
    %246 = vst.msk [vmem:[#allocation8 + $0x8] sm:$0xff] %vm56, %v244
    // Predicated region
    $region26: #{tpu_custom_call.1} parent=1 // pred_check
      _
    $region27: #{tpu_custom_call.1} parent=1 // pred_check_branch
      %248 = sbr.rel (0) target = $region29
    $region28: #{tpu_custom_call.1} parent=1 // pred_region
      %s250 = ssub.s32 256, 256
      %251 = vsyncadd [#allocation4], %s250
      %s252 = sshll.u32 [#allocation8], 4
      %s253 = int_to_ptr.vmem [resolvable:$true] %s252
      %258 = dma.vmem_to_hbm [thread:$0]  %s253, 256, %s3, [#allocation4], 128, 128, 8
    $region29: #{tpu_custom_call.1} parent=1 // pred_fallthru
      _
    // Predicated region
    $region30: #{tpu_custom_call.1} parent=1 // pred_check
      _
    $region31: #{tpu_custom_call.1} parent=1 // pred_check_branch
      %260 = sbr.rel (0) target = $region33
    $region32: #{tpu_custom_call.1} parent=1 // pred_region
      %261 = dma.done [#allocation4], 256
    $region33: #{tpu_custom_call.1} parent=1 // pred_fallthru
      _
    %262 = vsyncpa [#allocation3], 1
    %263 = vsyncpa [#allocation6], 1
    %264 = vsyncpa [#allocation4], 1

</llo_original>
